<compile_context>
chip_gen: v5e
topology: v5e:2x2
jax: 0.10.0
libtpu: 0.0.40
codegen_flags: <defaults>
</compile_context>

<pallas_src>
import numpy as np
import jax
import jax.numpy as jnp
from jax.experimental import pallas as pl
from jax.experimental.pallas import tpu as pltpu


# ------------------------- problem sizes (small) -------------------------
OBS_DIM = 128
QPOS_DIM = 32
ACTION_DIM = 16
HIDDEN_DIM = 64          # constructor arg; unused by forward (kept for fidelity)
BATCH = 8

D0 = OBS_DIM // 2        # 64
D1 = OBS_DIM // 4        # 32
D_VIS = OBS_DIM // 2     # 64  (vis_out output width)
CHIN = D_VIS + QPOS_DIM  # 96
D3 = CHIN // 2           # 48
D4 = CHIN // 4           # 24
D5 = CHIN // 8           # 12
D6 = CHIN // 4           # 24
EPS = 1e-5

PAD = 128                # every layer's OUTPUT is padded to a full lane tile
SUB = 16                 # bf16 sublane tile: slot starts/extents align to 16


def _rup(n, m=SUB):
    return ((n + m - 1) // m) * m


# Slot order: l0, l1, vis_out, l3(vis half), l3(qpos half), l4, l5, l6, l7
SLOT_DIN = (OBS_DIM, D0, D1, D_VIS, QPOS_DIM, D3, D4, D5, D6)
SLOT_DOUT = (D0, D1, D_VIS, D3, D3, D4, D5, D6, ACTION_DIM)
# bias-as-row: slot carries its bias in row DIN.  Slot 0 uses a separate row
# block (obs fills all 128 input lanes).  Slot 4 must NOT carry a bias — it is
# the qpos half of the concat matmul; the bias is counted once in slot 3.
SLOT_HAS_BROW = (False, True, True, True, False, True, True, True, True)
# column of the constant-1 lane each slot emits for the NEXT layer's bias row
# (== this slot's real output width == next layer's input width)
SLOT_ONE_COL = (None, D1, D_VIS, D3, None, D4, D5, D6, None)

SLOT_K = tuple(_rup(d + (1 if b else 0))
               for d, b in zip(SLOT_DIN, SLOT_HAS_BROW))    # rows per slot
_offs, _acc = [], 0
for _k in SLOT_K:
    _offs.append(_acc)
    _acc += _k
SLOT_OFF = tuple(_offs)          # (0, 128, 208, 256, 336, 368, 432, 464, 480)
OFF_B0 = _acc                    # 512: layer-0 bias row block (row 0 used)
TOTAL_ROWS = OFF_B0 + SUB        # 528  -> 528*128*2B = 132 KiB per branch


# ------------------------------ the kernel -------------------------------
def bc_kernel(obs_ref, qpos_ref, w_ref, out_ref):
    """Fused 8-layer MLP.  All weights+biases arrive in one packed bf16 buffer
    (static 16-aligned row slots); activations live in one f32 (8,128) vreg."""

    def mm(x, slot):
        off, k = SLOT_OFF[slot], SLOT_K[slot]
        return jnp.dot(x[:, :k].astype(jnp.bfloat16), w_ref[off:off + k, :],
                       preferred_element_type=jnp.float32)

    x = obs_ref[...]                                        # (B, 128) f32
    b0 = w_ref[OFF_B0:OFF_B0 + 1, :].astype(jnp.float32)    # l0 bias (+1-lane @ D0)
    x = jnp.maximum(mm(x, 0) + b0, 0.0)                     # l0 (+bn0 folded) + relu
    x = jnp.maximum(mm(x, 1), 0.0)                          # l1 (+bn1 folded) + relu
    vis = mm(x, 2)                                          # vis_out (vis_drop = id)
    # torch.cat([vis, qpos], 1) @ W3  ==  vis @ W3[:64] + qpos @ W3[64:]
    q = qpos_ref[...].astype(jnp.bfloat16)                  # (B, 32)
    x = mm(vis, 3) + jnp.dot(q, w_ref[SLOT_OFF[4]:SLOT_OFF[4] + SLOT_K[4], :],
                             preferred_element_type=jnp.float32)
    x = jnp.maximum(x, 0.0)                                 # l3 (+bn3 folded) + relu
    x = jnp.maximum(mm(x, 5), 0.0)                          # l4 (+bn4 folded) + relu
    x = jnp.maximum(mm(x, 6), 0.0)                          # l5 (+bn5 folded) + relu
    x = jnp.maximum(mm(x, 7), 0.0)                          # l6 (+bn6 folded) + relu
    out_ref[...] = mm(x, 8)                                 # l7 (pn_drop = identity)


_VMEM = pl.BlockSpec(memory_space=pltpu.MemorySpace.VMEM)


@jax.jit
def _bc_call(obs, qpos, w_packed):
    return pl.pallas_call(
        bc_kernel,
        out_shape=jax.ShapeDtypeStruct((BATCH, PAD), jnp.float32),
        in_specs=[_VMEM, _VMEM, _VMEM],
        out_specs=_VMEM,
        cost_estimate=pl.CostEstimate(
            flops=2 * BATCH * sum(k * PAD for k in SLOT_K),
            transcendentals=0,
            bytes_accessed=2 * TOTAL_ROWS * PAD
            + 4 * BATCH * (OBS_DIM + QPOS_DIM + PAD)),
    )(obs, qpos, w_packed)


# --------------------------- parameter helpers ----------------------------
def _linear_params(key, d_in, d_out, scale=0.1):
    kw, kb = jax.random.split(key)
    w = scale * jax.random.normal(kw, (d_in, d_out), jnp.float32)
    b = scale * jax.random.normal(kb, (1, d_out), jnp.float32)
    return w, b


def _bn_folded(key, d, eps=EPS):
    k1, k2, k3, k4 = jax.random.split(key, 4)
    gamma = 0.5 + jax.random.uniform(k1, (1, d), jnp.float32)           # [0.5, 1.5)
    beta = 0.1 * jax.random.normal(k2, (1, d), jnp.float32)
    running_mean = 0.1 * jax.random.normal(k3, (1, d), jnp.float32)
    running_var = 0.5 + jax.random.uniform(k4, (1, d), jnp.float32)     # positive
    scale = gamma / jnp.sqrt(running_var + eps)
    shift = beta - running_mean * scale
    return scale, shift


def make_params(seed=0):
    keys = jax.random.split(jax.random.PRNGKey(seed), 32)
    p = {}
    p["w0"], p["b0"] = _linear_params(keys[0], OBS_DIM, D0)
    p["real_bn0"] = _bn_folded(keys[1], D0)
    p["sim_bn0"] = _bn_folded(keys[2], D0)
    p["w1"], p["b1"] = _linear_params(keys[3], D0, D1)
    p["real_bn1"] = _bn_folded(keys[4], D1)
    p["sim_bn1"] = _bn_folded(keys[5], D1)
    p["wv"], p["bv"] = _linear_params(keys[6], D1, D_VIS)
    p["w3"], p["b3"] = _linear_params(keys[7], CHIN, D3)
    p["real_bn3"] = _bn_folded(keys[8], D3)
    p["sim_bn3"] = _bn_folded(keys[9], D3)
    p["w4"], p["b4"] = _linear_params(keys[10], D3, D4)
    p["real_bn4"] = _bn_folded(keys[11], D4)
    p["sim_bn4"] = _bn_folded(keys[12], D4)
    p["w5"], p["b5"] = _linear_params(keys[13], D4, D5)
    p["real_bn5"] = _bn_folded(keys[14], D5)
    p["sim_bn5"] = _bn_folded(keys[15], D5)
    p["w6"], p["b6"] = _linear_params(keys[16], D5, D6)
    p["real_bn6"] = _bn_folded(keys[17], D6)
    p["sim_bn6"] = _bn_folded(keys[18], D6)
    p["bn6"] = _bn_folded(keys[19], D6)      # shared bn6 used in the mixed branch
    p["w7"], p["b7"] = _linear_params(keys[20], D6, ACTION_DIM)
    return p


def _identity_bn(d):
    return jnp.ones((1, d), jnp.float32), jnp.zeros((1, d), jnp.float32)


# --------------------- per-branch parameter packing ------------------------
def _fold(w, b, bn):
    """Fold BatchNorm scale/shift into the preceding Linear."""
    if bn is None:
        return w, b
    s, t = bn
    return w * s, b * s + t


def _pack_branch(p, bns):
    """bns: layer-id -> (scale, shift) or None (no BN).  Returns the packed
    (TOTAL_ROWS, 128) bf16 buffer holding all weights, biases and 1-lanes."""
    buf = np.zeros((TOTAL_ROWS, PAD), np.float32)

    def place(slot, w, b=None):
        off = SLOT_OFF[slot]
        w = np.asarray(w, np.float32)
        din, dout = w.shape
        assert din == SLOT_DIN[slot] and dout == SLOT_DOUT[slot]
        buf[off:off + din, :dout] = w
        if SLOT_HAS_BROW[slot]:
            if b is not None:
                buf[off + din, :dout] = np.asarray(b, np.float32).reshape(-1)
            one = SLOT_ONE_COL[slot]
            if one is not None:
                buf[off + din, one] = 1.0   # emit the 1-lane for the next layer

    w0, b0 = _fold(p["w0"], p["b0"], bns[0])
    place(0, w0)
    # layer-0 bias lives in its own row block; it also injects the constant-1
    # lane (column D0) that layer 1's bias row consumes.
    buf[OFF_B0, :D0] = np.asarray(b0, np.float32).reshape(-1)
    buf[OFF_B0, D0] = 1.0

    w1, b1 = _fold(p["w1"], p["b1"], bns[1]); place(1, w1, b1)
    place(2, p["wv"], p["bv"])                         # vis_out (no BN)
    w3, b3 = _fold(p["w3"], p["b3"], bns[3])
    place(3, np.asarray(w3)[:D_VIS, :], b3)            # vis half (bias + 1-lane)
    place(4, np.asarray(w3)[D_VIS:, :])                # qpos half (no bias/1-lane)
    w4, b4 = _fold(p["w4"], p["b4"], bns[4]); place(5, w4, b4)
    w5, b5 = _fold(p["w5"], p["b5"], bns[5]); place(6, w5, b5)
    w6, b6 = _fold(p["w6"], p["b6"], bns[6]); place(7, w6, b6)
    place(8, p["w7"], p["b7"])
    return jnp.asarray(buf, dtype=jnp.bfloat16)


def pack_all_branches(p):
    real = {0: p["real_bn0"], 1: p["real_bn1"], 3: p["real_bn3"],
            4: p["real_bn4"], 5: p["real_bn5"], 6: p["real_bn6"]}
    sim = {0: p["sim_bn0"], 1: p["sim_bn1"], 3: p["sim_bn3"],
           4: p["sim_bn4"], 5: p["sim_bn5"], 6: p["sim_bn6"]}
    mixed = {0: None, 1: None, 3: None, 4: None, 5: None, 6: p["bn6"]}
    return {"real": _pack_branch(p, real),
            "sim": _pack_branch(p, sim),
            "mixed": _pack_branch(p, mixed)}


# ------------------------------- wrapper ----------------------------------
def _branch_name(sim_real_label):
    # NOTE: mirrors the original module exactly (all-ones -> real_bn*,
    # all-zeros -> sim_bn*, otherwise the mixed/bn6 branch).  Requires a
    # concrete (non-traced) label, just like the PyTorch Python-level branch.
    labels = list(np.asarray(sim_real_label).reshape(-1))
    if all(labels) and any(labels):
        return "real"
    if (not all(labels)) and (not any(labels)):
        return "sim"
    return "mixed"


def bc_forward(concatenated_obs, robot_qpos, sim_real_label, packed):
    """Mirrors BCNetwork.forward branch selection, then runs one fused kernel."""
    w_packed = packed[_branch_name(sim_real_label)]
    out = _bc_call(concatenated_obs, robot_qpos, w_packed)
    # Consumers that can take the lane-dense (B, 128) buffer should use `out`
    # directly; this slice exists only to match the module's output signature.
    return out[:, :ACTION_DIM]


# --------------------------- pure-JAX reference ----------------------------
def bc_reference(obs, qpos, sim_real_label, params):
    branch = _branch_name(sim_real_label)
    if branch == "real":
        bns = [params["real_bn0"], params["real_bn1"], params["real_bn3"],
               params["real_bn4"], params["real_bn5"], params["real_bn6"]]
    elif branch == "sim":
        bns = [params["sim_bn0"], params["sim_bn1"], params["sim_bn3"],
               params["sim_bn4"], params["sim_bn5"], params["sim_bn6"]]
    else:
        bns = [_identity_bn(D0), _identity_bn(D1), _identity_bn(D3),
               _identity_bn(D4), _identity_bn(D5), params["bn6"]]

    def lbr(x, w, b, bn):
        return jax.nn.relu((x @ w + b) * bn[0] + bn[1])

    x = lbr(obs, params["w0"], params["b0"], bns[0])
    x = lbr(x, params["w1"], params["b1"], bns[1])
    x = jnp.concatenate([x @ params["wv"] + params["bv"], qpos], axis=1)
    x = lbr(x, params["w3"], params["b3"], bns[2])
    x = lbr(x, params["w4"], params["b4"], bns[3])
    x = lbr(x, params["w5"], params["b5"], bns[4])
    x = lbr(x, params["w6"], params["b6"], bns[5])
    return x @ params["w7"] + params["b7"]


# --------------------------------- main ------------------------------------
if __name__ == "__main__":
    key = jax.random.PRNGKey(0)
    k_obs, k_qpos = jax.random.split(key)
    concatenated_obs = jax.random.normal(k_obs, (BATCH, OBS_DIM), jnp.float32)
    robot_qpos = jax.random.normal(k_qpos, (BATCH, QPOS_DIM), jnp.float32)
    params = make_params(seed=0)
    packed = pack_all_branches(params)   # BN folded + packed once, per branch

    # exercise all three label branches (same shapes -> single kernel compile)
    for label in ([1] * BATCH, [0] * BATCH, [1, 0] * (BATCH // 2)):
        out = bc_forward(concatenated_obs, robot_qpos, label, packed)
        out = jax.block_until_ready(out)
        ref = bc_reference(concatenated_obs, robot_qpos, label, params)
        assert out.shape == (BATCH, ACTION_DIM)
        # tolerance loosened vs. the pure-f32 reference: weights/biases are
        # packed in bf16 and activations are cast to bf16 at each dot input
        # (f32 accumulation), so per-layer relative error is ~2^-9.
        np.testing.assert_allclose(np.asarray(out), np.asarray(ref),
                                   rtol=3e-2, atol=3e-2)

    print("KERNEL_OK")
</pallas_src>

<mosaic_0001>
module attributes {stable_mosaic.version = 11 : i64} {
  func.func @bc_kernel(%arg0: memref<8x128xf32, #tpu.memory_space<vmem>>, %arg1: memref<8x32xf32, #tpu.memory_space<vmem>>, %arg2: memref<528x128xbf16, #tpu.memory_space<vmem>>, %arg3: memref<8x128xf32, #tpu.memory_space<vmem>>) attributes {dimension_semantics = [], scalar_prefetch = 0 : i64, scratch_operands = 0 : i64, tpu.core_type = #tpu.core_type<tc>} {
    %c0 = arith.constant 0 : index
    %c0_0 = arith.constant 0 : index
    %0 = vector.load %arg0[%c0, %c0_0] : memref<8x128xf32, #tpu.memory_space<vmem>>, vector<8x128xf32>
    %c512 = arith.constant 512 : index
    %c0_1 = arith.constant 0 : index
    %1 = vector.load %arg2[%c512, %c0_1] : memref<528x128xbf16, #tpu.memory_space<vmem>>, vector<1x128xbf16>
    %2 = arith.extf %1 : vector<1x128xbf16> to vector<1x128xf32>
    %3 = arith.truncf %0 : vector<8x128xf32> to vector<8x128xbf16>
    %c0_2 = arith.constant 0 : index
    %c0_3 = arith.constant 0 : index
    %4 = vector.load %arg2[%c0_2, %c0_3] : memref<528x128xbf16, #tpu.memory_space<vmem>>, vector<128x128xbf16>
    %cst = arith.constant dense<0.000000e+00> : vector<8x128xf32>
    %5 = tpu.matmul %3, %4, %cst {dimension_numbers = #tpu.dot_dimension_numbers<[1], [0], [0], [1], [0, 0, 1, 1], [], []>} : vector<8x128xbf16>, vector<128x128xbf16>, vector<8x128xf32> -> vector<8x128xf32>
    %6 = vector.broadcast %2 : vector<1x128xf32> to vector<8x128xf32>
    %7 = arith.addf %5, %6 : vector<8x128xf32>
    %cst_4 = arith.constant 0.000000e+00 : f32
    %8 = vector.broadcast %cst_4 : f32 to vector<8x128xf32>
    %9 = arith.maximumf %7, %8 : vector<8x128xf32>
    %10 = vector.extract_strided_slice %9 {offsets = [0, 0], sizes = [8, 80], strides = [1, 1]} : vector<8x128xf32> to vector<8x80xf32>
    %11 = arith.truncf %10 : vector<8x80xf32> to vector<8x80xbf16>
    %c128 = arith.constant 128 : index
    %c0_5 = arith.constant 0 : index
    %12 = vector.load %arg2[%c128, %c0_5] : memref<528x128xbf16, #tpu.memory_space<vmem>>, vector<80x128xbf16>
    %cst_6 = arith.constant dense<0.000000e+00> : vector<8x128xf32>
    %13 = tpu.matmul %11, %12, %cst_6 {dimension_numbers = #tpu.dot_dimension_numbers<[1], [0], [0], [1], [0, 0, 1, 1], [], []>} : vector<8x80xbf16>, vector<80x128xbf16>, vector<8x128xf32> -> vector<8x128xf32>
    %cst_7 = arith.constant 0.000000e+00 : f32
    %14 = vector.broadcast %cst_7 : f32 to vector<8x128xf32>
    %15 = arith.maximumf %13, %14 : vector<8x128xf32>
    %16 = vector.extract_strided_slice %15 {offsets = [0, 0], sizes = [8, 48], strides = [1, 1]} : vector<8x128xf32> to vector<8x48xf32>
    %17 = arith.truncf %16 : vector<8x48xf32> to vector<8x48xbf16>
    %c208 = arith.constant 208 : index
    %c0_8 = arith.constant 0 : index
    %18 = vector.load %arg2[%c208, %c0_8] : memref<528x128xbf16, #tpu.memory_space<vmem>>, vector<48x128xbf16>
    %cst_9 = arith.constant dense<0.000000e+00> : vector<8x128xf32>
    %19 = tpu.matmul %17, %18, %cst_9 {dimension_numbers = #tpu.dot_dimension_numbers<[1], [0], [0], [1], [0, 0, 1, 1], [], []>} : vector<8x48xbf16>, vector<48x128xbf16>, vector<8x128xf32> -> vector<8x128xf32>
    %c0_10 = arith.constant 0 : index
    %c0_11 = arith.constant 0 : index
    %20 = vector.load %arg1[%c0_10, %c0_11] : memref<8x32xf32, #tpu.memory_space<vmem>>, vector<8x32xf32>
    %21 = arith.truncf %20 : vector<8x32xf32> to vector<8x32xbf16>
    %22 = vector.extract_strided_slice %19 {offsets = [0, 0], sizes = [8, 80], strides = [1, 1]} : vector<8x128xf32> to vector<8x80xf32>
    %23 = arith.truncf %22 : vector<8x80xf32> to vector<8x80xbf16>
    %c256 = arith.constant 256 : index
    %c0_12 = arith.constant 0 : index
    %24 = vector.load %arg2[%c256, %c0_12] : memref<528x128xbf16, #tpu.memory_space<vmem>>, vector<80x128xbf16>
    %cst_13 = arith.constant dense<0.000000e+00> : vector<8x128xf32>
    %25 = tpu.matmul %23, %24, %cst_13 {dimension_numbers = #tpu.dot_dimension_numbers<[1], [0], [0], [1], [0, 0, 1, 1], [], []>} : vector<8x80xbf16>, vector<80x128xbf16>, vector<8x128xf32> -> vector<8x128xf32>
    %c336 = arith.constant 336 : index
    %c0_14 = arith.constant 0 : index
    %26 = vector.load %arg2[%c336, %c0_14] : memref<528x128xbf16, #tpu.memory_space<vmem>>, vector<32x128xbf16>
    %cst_15 = arith.constant dense<0.000000e+00> : vector<8x128xf32>
    %27 = tpu.matmul %21, %26, %cst_15 {dimension_numbers = #tpu.dot_dimension_numbers<[1], [0], [0], [1], [0, 0, 1, 1], [], []>} : vector<8x32xbf16>, vector<32x128xbf16>, vector<8x128xf32> -> vector<8x128xf32>
    %28 = arith.addf %25, %27 : vector<8x128xf32>
    %cst_16 = arith.constant 0.000000e+00 : f32
    %29 = vector.broadcast %cst_16 : f32 to vector<8x128xf32>
    %30 = arith.maximumf %28, %29 : vector<8x128xf32>
    %31 = vector.extract_strided_slice %30 {offsets = [0, 0], sizes = [8, 64], strides = [1, 1]} : vector<8x128xf32> to vector<8x64xf32>
    %32 = arith.truncf %31 : vector<8x64xf32> to vector<8x64xbf16>
    %c368 = arith.constant 368 : index
    %c0_17 = arith.constant 0 : index
    %33 = vector.load %arg2[%c368, %c0_17] : memref<528x128xbf16, #tpu.memory_space<vmem>>, vector<64x128xbf16>
    %cst_18 = arith.constant dense<0.000000e+00> : vector<8x128xf32>
    %34 = tpu.matmul %32, %33, %cst_18 {dimension_numbers = #tpu.dot_dimension_numbers<[1], [0], [0], [1], [0, 0, 1, 1], [], []>} : vector<8x64xbf16>, vector<64x128xbf16>, vector<8x128xf32> -> vector<8x128xf32>
    %cst_19 = arith.constant 0.000000e+00 : f32
    %35 = vector.broadcast %cst_19 : f32 to vector<8x128xf32>
    %36 = arith.maximumf %34, %35 : vector<8x128xf32>
    %37 = vector.extract_strided_slice %36 {offsets = [0, 0], sizes = [8, 32], strides = [1, 1]} : vector<8x128xf32> to vector<8x32xf32>
    %38 = arith.truncf %37 : vector<8x32xf32> to vector<8x32xbf16>
    %c432 = arith.constant 432 : index
    %c0_20 = arith.constant 0 : index
    %39 = vector.load %arg2[%c432, %c0_20] : memref<528x128xbf16, #tpu.memory_space<vmem>>, vector<32x128xbf16>
    %cst_21 = arith.constant dense<0.000000e+00> : vector<8x128xf32>
    %40 = tpu.matmul %38, %39, %cst_21 {dimension_numbers = #tpu.dot_dimension_numbers<[1], [0], [0], [1], [0, 0, 1, 1], [], []>} : vector<8x32xbf16>, vector<32x128xbf16>, vector<8x128xf32> -> vector<8x128xf32>
    %cst_22 = arith.constant 0.000000e+00 : f32
    %41 = vector.broadcast %cst_22 : f32 to vector<8x128xf32>
    %42 = arith.maximumf %40, %41 : vector<8x128xf32>
    %43 = vector.extract_strided_slice %42 {offsets = [0, 0], sizes = [8, 16], strides = [1, 1]} : vector<8x128xf32> to vector<8x16xf32>
    %44 = arith.truncf %43 : vector<8x16xf32> to vector<8x16xbf16>
    %c464 = arith.constant 464 : index
    %c0_23 = arith.constant 0 : index
    %45 = vector.load %arg2[%c464, %c0_23] : memref<528x128xbf16, #tpu.memory_space<vmem>>, vector<16x128xbf16>
    %cst_24 = arith.constant dense<0.000000e+00> : vector<8x128xf32>
    %46 = tpu.matmul %44, %45, %cst_24 {dimension_numbers = #tpu.dot_dimension_numbers<[1], [0], [0], [1], [0, 0, 1, 1], [], []>} : vector<8x16xbf16>, vector<16x128xbf16>, vector<8x128xf32> -> vector<8x128xf32>
    %cst_25 = arith.constant 0.000000e+00 : f32
    %47 = vector.broadcast %cst_25 : f32 to vector<8x128xf32>
    %48 = arith.maximumf %46, %47 : vector<8x128xf32>
    %49 = vector.extract_strided_slice %48 {offsets = [0, 0], sizes = [8, 32], strides = [1, 1]} : vector<8x128xf32> to vector<8x32xf32>
    %50 = arith.truncf %49 : vector<8x32xf32> to vector<8x32xbf16>
    %c480 = arith.constant 480 : index
    %c0_26 = arith.constant 0 : index
    %51 = vector.load %arg2[%c480, %c0_26] : memref<528x128xbf16, #tpu.memory_space<vmem>>, vector<32x128xbf16>
    %cst_27 = arith.constant dense<0.000000e+00> : vector<8x128xf32>
    %52 = tpu.matmul %50, %51, %cst_27 {dimension_numbers = #tpu.dot_dimension_numbers<[1], [0], [0], [1], [0, 0, 1, 1], [], []>} : vector<8x32xbf16>, vector<32x128xbf16>, vector<8x128xf32> -> vector<8x128xf32>
    %c0_28 = arith.constant 0 : index
    %c0_29 = arith.constant 0 : index
    %53 = vector.load %arg3[%c0_28, %c0_29] : memref<8x128xf32, #tpu.memory_space<vmem>>, vector<8x128xf32>
    tpu.vector_store %arg3[%c0_28, %c0_29], %52 {strides = array<i32>} : memref<8x128xf32, #tpu.memory_space<vmem>>, vector<8x128xf32>,
    return
  }
}

</mosaic_0001>

<llo_original>
// kernel: _bc_call.1
$region0: #{_bc_call.1}
  #allocation0 [shape = 'u32[]', space=smem, size = 0x4, offset = 0x4, fixed_abs, tag = 'smem constant byte address 0x4 - core index']
  #allocation1 [shape = 'u32[72,128]{1,0:T(1,128)}', space=vmem, size = 0x9000, scoped, tag = 'internal scratch']
  %s0 = inlined_call_operand.hbm [shape: f32[8,128], index: 0, kind: input, shape index: {}]
  %s1 = inlined_call_operand.hbm [shape: f32[8,32], index: 1, kind: input, shape index: {}]
  %s2 = inlined_call_operand.hbm [shape: bf16[528,128], index: 2, kind: input, shape index: {}]
  %s3 = inlined_call_operand.hbm [shape: f32[8,128], index: 3, kind: output, shape index: {}]
  %s4 = sld [smem:[#allocation0]]
  $region34: #{_bc_call.1} parent=0
    _
  %s6 = ssub.s32 1, %s4
  %s7 = scalar_select 0, %s6, %s4
  $region1: #{_bc_call.1} parent=0
    #allocation2 [shape = 'u8[4096]{0}', space=vmem, size = 0x1000, scoped, tag = 'input window, operand 0, single buffered']
    #allocation3 [shape = 's32[1]{0}', space=sflag, size = 0x4, scoped, tag = 'scoped memory for _bc_call.1']
    #allocation4 [shape = 's32[1]{0}', space=sflag, size = 0x4, scoped, tag = 'scoped memory for _bc_call.1']
    #allocation5 [shape = 'u8[4096]{0}', space=vmem, size = 0x1000, scoped, tag = 'input window, operand 1, single buffered']
    #allocation6 [shape = 's32[1]{0}', space=sflag, size = 0x4, scoped, tag = 'scoped memory for _bc_call.1']
    #allocation7 [shape = 'u8[135168]{0}', space=vmem, size = 0x21000, scoped, tag = 'input window, operand 2, single buffered']
    #allocation8 [shape = 'u8[4096]{0}', space=vmem, size = 0x1000, scoped, tag = 'output window, operand 0, single buffered']
    %8 = vsyncpa [#allocation3], 0
    %9 = vsyncpa [#allocation6], 0
    %10 = vsyncpa [#allocation4], 0
    // Predicated region
    $region2: #{_bc_call.1} parent=1 // pred_check
      _
    $region3: #{_bc_call.1} parent=1 // pred_check_branch
      %12 = sbr.rel (0) target = $region5
    $region4: #{_bc_call.1} parent=1 // pred_region
      %14 = vsyncadd [#allocation3], 0
      %s16 = sshll.u32 %s0, 4
      %s17 = int_to_ptr.hbm [resolvable:$true] %s16
      %s18 = sshll.u32 [#allocation2], 4
      %s19 = int_to_ptr.vmem [resolvable:$true] %s18
      %21 = dma.hbm_to_vmem [thread:$0]  %s17, 128, %s19, [#allocation3]
    $region5: #{_bc_call.1} parent=1 // pred_fallthru
      _
    // Predicated region
    $region6: #{_bc_call.1} parent=1 // pred_check
      _
    $region7: #{_bc_call.1} parent=1 // pred_check_branch
      %23 = sbr.rel (0) target = $region9
    $region8: #{_bc_call.1} parent=1 // pred_region
      %25 = vsyncadd [#allocation6], 0
      %s27 = sshll.u32 %s1, 4
      %s28 = int_to_ptr.hbm [resolvable:$true] %s27
      %s29 = sshll.u32 [#allocation5], 4
      %s30 = int_to_ptr.vmem [resolvable:$true] %s29
      %32 = dma.hbm_to_vmem [thread:$0]  %s28, 128, %s30, [#allocation6]
    $region9: #{_bc_call.1} parent=1 // pred_fallthru
      _
    // Predicated region
    $region10: #{_bc_call.1} parent=1 // pred_check
      _
    $region11: #{_bc_call.1} parent=1 // pred_check_branch
      %34 = sbr.rel (0) target = $region13
    $region12: #{_bc_call.1} parent=1 // pred_region
      %36 = vsyncadd [#allocation6], 0
      %s37 = sshll.u32 %s2, 4
      %s38 = int_to_ptr.hbm [resolvable:$true] %s37
      %s39 = sshll.u32 [#allocation7], 4
      %s40 = int_to_ptr.vmem [resolvable:$true] %s39
      %45 = dma.hbm_to_vmem [thread:$0]  %s38, 4224, %s40, [#allocation6], 64, 64, 4
    $region13: #{_bc_call.1} parent=1 // pred_fallthru
      _
    // Predicated region
    $region14: #{_bc_call.1} parent=1 // pred_check
      _
    $region15: #{_bc_call.1} parent=1 // pred_check_branch
      %47 = sbr.rel (0) target = $region17
    $region16: #{_bc_call.1} parent=1 // pred_region
      %49 = dma.done [#allocation3], 128
    $region17: #{_bc_call.1} parent=1 // pred_fallthru
      _
    // Predicated region
    $region18: #{_bc_call.1} parent=1 // pred_check
      _
    $region19: #{_bc_call.1} parent=1 // pred_check_branch
      %51 = sbr.rel (0) target = $region21
    $region20: #{_bc_call.1} parent=1 // pred_region
      %53 = dma.done [#allocation6], 128
    $region21: #{_bc_call.1} parent=1 // pred_fallthru
      _
    // Predicated region
    $region22: #{_bc_call.1} parent=1 // pred_check
      _
    $region23: #{_bc_call.1} parent=1 // pred_check_branch
      %55 = sbr.rel (0) target = $region25
    $region24: #{_bc_call.1} parent=1 // pred_region
      %57 = dma.done [#allocation6], 4224
    $region25: #{_bc_call.1} parent=1 // pred_fallthru
      _
    %v59 = vld [vmem:[#allocation2] sm:$0xff]
    %v60 = vld [vmem:[#allocation7 + $0x100] sm:$0x1]
    %v61 = vunpack.c.l.bf16 %v60
    %v62 = vpack.c.bf16 %v59, %v59
    %v63 = vld [vmem:[#allocation7] sm:$0xf]
    %v64 = vld [vmem:[#allocation7 + $0x4] sm:$0xf]
    %v65 = vld [vmem:[#allocation7 + $0x8] sm:$0xf]
    %v66 = vld [vmem:[#allocation7 + $0xc] sm:$0xf]
    %v67 = vld [vmem:[#allocation7 + $0x10] sm:$0xf]
    %v68 = vld [vmem:[#allocation7 + $0x14] sm:$0xf]
    %v69 = vld [vmem:[#allocation7 + $0x18] sm:$0xf]
    %v70 = vld [vmem:[#allocation7 + $0x1c] sm:$0xf]
    %v71 = vld [vmem:[#allocation7 + $0x20] sm:$0xf]
    %v72 = vld [vmem:[#allocation7 + $0x24] sm:$0xf]
    %v73 = vld [vmem:[#allocation7 + $0x28] sm:$0xf]
    %v74 = vld [vmem:[#allocation7 + $0x2c] sm:$0xf]
    %v75 = vld [vmem:[#allocation7 + $0x30] sm:$0xf]
    %v76 = vld [vmem:[#allocation7 + $0x34] sm:$0xf]
    %v77 = vld [vmem:[#allocation7 + $0x38] sm:$0xf]
    %v78 = vld [vmem:[#allocation7 + $0x3c] sm:$0xf]
    %v79 = vperm.slane %v61, 0
    %v96 = vunpack.c.l.b16 %v63
    %v97 = vunpack.c.l.b16 %v64
    %v98 = vunpack.c.l.b16 %v65
    %v99 = vunpack.c.l.b16 %v66
    %v100 = vunpack.c.l.b16 %v67
    %v101 = vunpack.c.l.b16 %v68
    %v102 = vunpack.c.l.b16 %v69
    %v103 = vunpack.c.l.b16 %v70
    %v104 = vunpack.c.l.b16 %v71
    %v105 = vunpack.c.l.b16 %v72
    %v106 = vunpack.c.l.b16 %v73
    %v107 = vunpack.c.l.b16 %v74
    %v108 = vunpack.c.l.b16 %v75
    %v109 = vunpack.c.l.b16 %v76
    %v110 = vunpack.c.l.b16 %v77
    %v111 = vunpack.c.l.b16 %v78
    %v112 = vpack.c.b16 %v97, %v96
    %v113 = vpack.c.b16 %v99, %v98
    %v114 = vpack.c.b16 %v101, %v100
    %v115 = vpack.c.b16 %v103, %v102
    %v116 = vpack.c.b16 %v105, %v104
    %v117 = vpack.c.b16 %v107, %v106
    %v118 = vpack.c.b16 %v109, %v108
    %v119 = vpack.c.b16 %v111, %v110
    %128 = vmatpush.bf16.msra.mxu0 %v119
    %129 = vmatpush.bf16.msra.mxu0 %v118
    %130 = vmatpush.bf16.msra.mxu0 %v117
    %131 = vmatpush.bf16.msra.mxu0 %v116
    %132 = vmatpush.bf16.msra.mxu0 %v115
    %133 = vmatpush.bf16.msra.mxu0 %v114
    %134 = vmatpush.bf16.msra.mxu0 %v113
    %135 = vmatpush.bf16.msra.mxu0 %v112
    %136 = vmatmul.bf16.gmra.mxu0 %v62
    %v137 = vpop.f32.mrf.mxu0
    %v138 = vadd.f32 %v79, %v137
    %v139 = vpop.f32.mrf.mxu0
    %140 = vdwg.mxu0
    %v141 = vmax.f32 %v138, 0.0
    %v142 = vpack.c.bf16 %v141, %v141
    %v143 = vld [vmem:[#allocation7 + $0x40] sm:$0xf]
    %v144 = vld [vmem:[#allocation7 + $0x44] sm:$0xf]
    %v145 = vld [vmem:[#allocation7 + $0x48] sm:$0xf]
    %v146 = vld [vmem:[#allocation7 + $0x4c] sm:$0xf]
    %v147 = vld [vmem:[#allocation7 + $0x50] sm:$0xf]
    %v148 = vld [vmem:[#allocation7 + $0x54] sm:$0xf]
    %v149 = vld [vmem:[#allocation7 + $0x58] sm:$0xf]
    %v150 = vld [vmem:[#allocation7 + $0x5c] sm:$0xf]
    %v151 = vld [vmem:[#allocation7 + $0x60] sm:$0xf]
    %v152 = vld [vmem:[#allocation7 + $0x64] sm:$0xf]
    %v163 = vunpack.c.l.b16 %v143
    %v164 = vunpack.c.l.b16 %v144
    %v165 = vunpack.c.l.b16 %v145
    %v166 = vunpack.c.l.b16 %v146
    %v167 = vunpack.c.l.b16 %v147
    %v168 = vunpack.c.l.b16 %v148
    %v169 = vunpack.c.l.b16 %v149
    %v170 = vunpack.c.l.b16 %v150
    %v171 = vunpack.c.l.b16 %v151
    %v172 = vunpack.c.l.b16 %v152
    %v173 = vpack.c.b16 %v164, %v163
    %v174 = vpack.c.b16 %v166, %v165
    %v175 = vpack.c.b16 %v168, %v167
    %v176 = vpack.c.b16 %v170, %v169
    %v177 = vpack.c.b16 %v172, %v171
    %vm183 = vcmask 654336
    %v185 = vsel %vm183, %v142, 0
    %187 = vmatpush.bf16.msra.mxu0 0
    %188 = vmatpush.bf16.msra.mxu0 0
    %189 = vmatpush.bf16.msra.mxu0 0
    %190 = vmatpush.bf16.msra.mxu0 %v177
    %191 = vmatpush.bf16.msra.mxu0 %v176
    %192 = vmatpush.bf16.msra.mxu0 %v175
    %193 = vmatpush.bf16.msra.mxu0 %v174
    %194 = vmatpush.bf16.msra.mxu0 %v173
    %195 = vmatmul.bf16.gmra.mxu0 %v185
    %v196 = vpop.f32.mrf.mxu0
    %v197 = vadd.f32 0.0, %v196
    %v198 = vpop.f32.mrf.mxu0
    %199 = vdwg.mxu0
    %v200 = vmax.f32 %v197, 0.0
    %v201 = vpack.c.bf16 %v200, %v200
    %v202 = vld [vmem:[#allocation7 + $0x68] sm:$0xf]
    %v203 = vld [vmem:[#allocation7 + $0x6c] sm:$0xf]
    %v204 = vld [vmem:[#allocation7 + $0x70] sm:$0xf]
    %v205 = vld [vmem:[#allocation7 + $0x74] sm:$0xf]
    %v206 = vld [vmem:[#allocation7 + $0x78] sm:$0xf]
    %v207 = vld [vmem:[#allocation7 + $0x7c] sm:$0xf]
    %v214 = vunpack.c.l.b16 %v202
    %v215 = vunpack.c.l.b16 %v203
    %v216 = vunpack.c.l.b16 %v204
    %v217 = vunpack.c.l.b16 %v205
    %v218 = vunpack.c.l.b16 %v206
    %v219 = vunpack.c.l.b16 %v207
    %v220 = vpack.c.b16 %v215, %v214
    %v221 = vpack.c.b16 %v217, %v216
    %v222 = vpack.c.b16 %v219, %v218
    %vm226 = vcmask 392192
    %v228 = vsel %vm226, %v201, 0
    %230 = vmatpush.bf16.msra.mxu0 0
    %231 = vmatpush.bf16.msra.mxu0 0
    %232 = vmatpush.bf16.msra.mxu0 0
    %233 = vmatpush.bf16.msra.mxu0 0
    %234 = vmatpush.bf16.msra.mxu0 0
    %235 = vmatpush.bf16.msra.mxu0 %v222
    %236 = vmatpush.bf16.msra.mxu0 %v221
    %237 = vmatpush.bf16.msra.mxu0 %v220
    %238 = vmatmul.bf16.gmra.mxu0 %v228
    %v239 = vpop.f32.mrf.mxu0
    %v240 = vadd.f32 0.0, %v239
    %v241 = vpop.f32.mrf.mxu0
    %242 = vdwg.mxu0
    %v243 = vld [vmem:[#allocation5] sm:$0xff]
    %v244 = vpack.c.bf16 %v243, %v243
    %v245 = vpack.c.bf16 %v240, %v240
    %v246 = vld [vmem:[#allocation7 + $0x80] sm:$0xf]
    %v247 = vld [vmem:[#allocation7 + $0x84] sm:$0xf]
    %v248 = vld [vmem:[#allocation7 + $0x88] sm:$0xf]
    %v249 = vld [vmem:[#allocation7 + $0x8c] sm:$0xf]
    %v250 = vld [vmem:[#allocation7 + $0x90] sm:$0xf]
    %v251 = vld [vmem:[#allocation7 + $0x94] sm:$0xf]
    %v252 = vld [vmem:[#allocation7 + $0x98] sm:$0xf]
    %v253 = vld [vmem:[#allocation7 + $0x9c] sm:$0xf]
    %v254 = vld [vmem:[#allocation7 + $0xa0] sm:$0xf]
    %v255 = vld [vmem:[#allocation7 + $0xa4] sm:$0xf]
    %v256 = vld [vmem:[#allocation7 + $0xa8] sm:$0xf]
    %v257 = vld [vmem:[#allocation7 + $0xac] sm:$0xf]
    %v258 = vld [vmem:[#allocation7 + $0xb0] sm:$0xf]
    %v259 = vld [vmem:[#allocation7 + $0xb4] sm:$0xf]
    %v264 = vunpack.c.l.b16 %v256
    %v265 = vunpack.c.l.b16 %v257
    %v266 = vunpack.c.l.b16 %v258
    %v267 = vunpack.c.l.b16 %v259
    %v268 = vpack.c.b16 %v265, %v264
    %v269 = vpack.c.b16 %v267, %v266
    %vm272 = vcmask 261120
    %v274 = vsel %vm272, %v244, 0
    %276 = vmatpush.bf16.msra.mxu0 0
    %277 = vmatpush.bf16.msra.mxu0 0
    %278 = vmatpush.bf16.msra.mxu0 0
    %279 = vmatpush.bf16.msra.mxu0 0
    %280 = vmatpush.bf16.msra.mxu0 0
    %281 = vmatpush.bf16.msra.mxu0 0
    %282 = vmatpush.bf16.msra.mxu0 %v269
    %283 = vmatpush.bf16.msra.mxu0 %v268
    %284 = vmatmul.bf16.gmra.mxu0 %v274
    %v285 = vpop.f32.mrf.mxu0
    %v286 = vadd.f32 0.0, %v285
    %v287 = vpop.f32.mrf.mxu0
    %288 = vdwg.mxu0
    %v299 = vunpack.c.l.b16 %v246
    %v300 = vunpack.c.l.b16 %v247
    %v301 = vunpack.c.l.b16 %v248
    %v302 = vunpack.c.l.b16 %v249
    %v303 = vunpack.c.l.b16 %v250
    %v304 = vunpack.c.l.b16 %v251
    %v305 = vunpack.c.l.b16 %v252
    %v306 = vunpack.c.l.b16 %v253
    %v307 = vunpack.c.l.b16 %v254
    %v308 = vunpack.c.l.b16 %v255
    %v309 = vpack.c.b16 %v300, %v299
    %v310 = vpack.c.b16 %v302, %v301
    %v311 = vpack.c.b16 %v304, %v303
    %v312 = vpack.c.b16 %v306, %v305
    %v313 = vpack.c.b16 %v308, %v307
    %v320 = vsel %vm183, %v245, 0
    %322 = vmatpush.bf16.msra.mxu0 0
    %323 = vmatpush.bf16.msra.mxu0 0
    %324 = vmatpush.bf16.msra.mxu0 0
    %325 = vmatpush.bf16.msra.mxu0 %v313
    %326 = vmatpush.bf16.msra.mxu0 %v312
    %327 = vmatpush.bf16.msra.mxu0 %v311
    %328 = vmatpush.bf16.msra.mxu0 %v310
    %329 = vmatpush.bf16.msra.mxu0 %v309
    %330 = vmatmul.bf16.gmra.mxu0 %v320
    %v331 = vpop.f32.mrf.mxu0
    %v332 = vadd.f32 %v286, %v331
    %v333 = vpop.f32.mrf.mxu0
    %334 = vdwg.mxu0
    %v335 = vmax.f32 %v332, 0.0
    %v336 = vpack.c.bf16 %v335, %v335
    %v337 = vld [vmem:[#allocation7 + $0xb8] sm:$0xf]
    %v338 = vld [vmem:[#allocation7 + $0xbc] sm:$0xf]
    %v339 = vld [vmem:[#allocation7 + $0xc0] sm:$0xf]
    %v340 = vld [vmem:[#allocation7 + $0xc4] sm:$0xf]
    %v341 = vld [vmem:[#allocation7 + $0xc8] sm:$0xf]
    %v342 = vld [vmem:[#allocation7 + $0xcc] sm:$0xf]
    %v343 = vld [vmem:[#allocation7 + $0xd0] sm:$0xf]
    %v344 = vld [vmem:[#allocation7 + $0xd4] sm:$0xf]
    %v353 = vunpack.c.l.b16 %v337
    %v354 = vunpack.c.l.b16 %v338
    %v355 = vunpack.c.l.b16 %v339
    %v356 = vunpack.c.l.b16 %v340
    %v357 = vunpack.c.l.b16 %v341
    %v358 = vunpack.c.l.b16 %v342
    %v359 = vunpack.c.l.b16 %v343
    %v360 = vunpack.c.l.b16 %v344
    %v361 = vpack.c.b16 %v354, %v353
    %v362 = vpack.c.b16 %v356, %v355
    %v363 = vpack.c.b16 %v358, %v357
    %v364 = vpack.c.b16 %v360, %v359
    %vm369 = vcmask 523264
    %v371 = vsel %vm369, %v336, 0
    %373 = vmatpush.bf16.msra.mxu0 0
    %374 = vmatpush.bf16.msra.mxu0 0
    %375 = vmatpush.bf16.msra.mxu0 0
    %376 = vmatpush.bf16.msra.mxu0 0
    %377 = vmatpush.bf16.msra.mxu0 %v364
    %378 = vmatpush.bf16.msra.mxu0 %v363
    %379 = vmatpush.bf16.msra.mxu0 %v362
    %380 = vmatpush.bf16.msra.mxu0 %v361
    %381 = vmatmul.bf16.gmra.mxu0 %v371
    %v382 = vpop.f32.mrf.mxu0
    %v383 = vadd.f32 0.0, %v382
    %v384 = vpop.f32.mrf.mxu0
    %385 = vdwg.mxu0
    %v386 = vmax.f32 %v383, 0.0
    %v387 = vpack.c.bf16 %v386, %v386
    %v388 = vld [vmem:[#allocation7 + $0xd8] sm:$0xf]
    %v389 = vld [vmem:[#allocation7 + $0xdc] sm:$0xf]
    %v390 = vld [vmem:[#allocation7 + $0xe0] sm:$0xf]
    %v391 = vld [vmem:[#allocation7 + $0xe4] sm:$0xf]
    %v396 = vunpack.c.l.b16 %v388
    %v397 = vunpack.c.l.b16 %v389
    %v398 = vunpack.c.l.b16 %v390
    %v399 = vunpack.c.l.b16 %v391
    %v400 = vpack.c.b16 %v397, %v396
    %v401 = vpack.c.b16 %v399, %v398
    %v405 = vsel %vm272, %v387, 0
    %407 = vmatpush.bf16.msra.mxu0 0
    %408 = vmatpush.bf16.msra.mxu0 0
    %409 = vmatpush.bf16.msra.mxu0 0
    %410 = vmatpush.bf16.msra.mxu0 0
    %411 = vmatpush.bf16.msra.mxu0 0
    %412 = vmatpush.bf16.msra.mxu0 0
    %413 = vmatpush.bf16.msra.mxu0 %v401
    %414 = vmatpush.bf16.msra.mxu0 %v400
    %415 = vmatmul.bf16.gmra.mxu0 %v405
    %v416 = vpop.f32.mrf.mxu0
    %v417 = vadd.f32 0.0, %v416
    %v418 = vpop.f32.mrf.mxu0
    %419 = vdwg.mxu0
    %v420 = vmax.f32 %v417, 0.0
    %v421 = vpack.c.bf16 %v420, %v420
    %v422 = vld [vmem:[#allocation7 + $0xe8] sm:$0xf]
    %v423 = vld [vmem:[#allocation7 + $0xec] sm:$0xf]
    %v426 = vunpack.c.l.b16 %v422
    %v427 = vunpack.c.l.b16 %v423
    %v428 = vpack.c.b16 %v427, %v426
    %vm430 = vcmask 130048
    %v432 = vsel %vm430, %v421, 0
    %434 = vmatpush.bf16.msra.mxu0 0
    %435 = vmatpush.bf16.msra.mxu0 0
    %436 = vmatpush.bf16.msra.mxu0 0
    %437 = vmatpush.bf16.msra.mxu0 0
    %438 = vmatpush.bf16.msra.mxu0 0
    %439 = vmatpush.bf16.msra.mxu0 0
    %440 = vmatpush.bf16.msra.mxu0 0
    %441 = vmatpush.bf16.msra.mxu0 %v428
    %442 = vmatmul.bf16.gmra.mxu0 %v432
    %v443 = vpop.f32.mrf.mxu0
    %v444 = vadd.f32 0.0, %v443
    %v445 = vpop.f32.mrf.mxu0
    %446 = vdwg.mxu0
    %v447 = vmax.f32 %v444, 0.0
    %v448 = vpack.c.bf16 %v447, %v447
    %v449 = vld [vmem:[#allocation7 + $0xf0] sm:$0xf]
    %v450 = vld [vmem:[#allocation7 + $0xf4] sm:$0xf]
    %v451 = vld [vmem:[#allocation7 + $0xf8] sm:$0xf]
    %v452 = vld [vmem:[#allocation7 + $0xfc] sm:$0xf]
    %v457 = vunpack.c.l.b16 %v449
    %v458 = vunpack.c.l.b16 %v450
    %v459 = vunpack.c.l.b16 %v451
    %v460 = vunpack.c.l.b16 %v452
    %v461 = vpack.c.b16 %v458, %v457
    %v462 = vpack.c.b16 %v460, %v459
    %v466 = vsel %vm272, %v448, 0
    %468 = vmatpush.bf16.msra.mxu0 0
    %469 = vmatpush.bf16.msra.mxu0 0
    %470 = vmatpush.bf16.msra.mxu0 0
    %471 = vmatpush.bf16.msra.mxu0 0
    %472 = vmatpush.bf16.msra.mxu0 0
    %473 = vmatpush.bf16.msra.mxu0 0
    %474 = vmatpush.bf16.msra.mxu0 %v462
    %475 = vmatpush.bf16.msra.mxu0 %v461
    %476 = vmatmul.bf16.gmra.mxu0 %v466
    %v477 = vpop.f32.mrf.mxu0
    %v478 = vadd.f32 0.0, %v477
    %v479 = vpop.f32.mrf.mxu0
    %480 = vdwg.mxu0
    %481 = vst [vmem:[#allocation8] sm:$0xff] %v478
    // Predicated region
    $region26: #{_bc_call.1} parent=1 // pred_check
      _
    $region27: #{_bc_call.1} parent=1 // pred_check_branch
      %483 = sbr.rel (0) target = $region29
    $region28: #{_bc_call.1} parent=1 // pred_region
      %485 = vsyncadd [#allocation4], 0
      %s487 = sshll.u32 [#allocation8], 4
      %s488 = int_to_ptr.vmem [resolvable:$true] %s487
      %s489 = sshll.u32 %s3, 4
      %s490 = int_to_ptr.hbm [resolvable:$true] %s489
      %492 = dma.vmem_to_hbm [thread:$0]  %s488, 128, %s490, [#allocation4]
    $region29: #{_bc_call.1} parent=1 // pred_fallthru
      _
    // Predicated region
    $region30: #{_bc_call.1} parent=1 // pred_check
      _
    $region31: #{_bc_call.1} parent=1 // pred_check_branch
      %494 = sbr.rel (0) target = $region33
    $region32: #{_bc_call.1} parent=1 // pred_region
      %496 = dma.done [#allocation4], 128
    $region33: #{_bc_call.1} parent=1 // pred_fallthru
      _
    %497 = vsyncpa [#allocation3], 1
    %498 = vsyncpa [#allocation6], 1
    %499 = vsyncpa [#allocation4], 1

</llo_original>
